<compile_context>
chip_gen: v7x
topology: tpu7x:2x2x1
jax: 0.10.0
libtpu: 0.0.40
codegen_flags: <defaults>
</compile_context>

<pallas_src>
import functools

import jax
import jax.numpy as jnp
from jax.experimental import pallas as pl
from jax.experimental.pallas import tpu as pltpu

LANES = 128
MAX_TILE_ROWS = 8192                 # (8192, 128) f32 = 4 MiB per pipeline buffer
VMEM_LIMIT_BYTES = 24 * 1024 * 1024  # 2 inputs x 2 buffers x 4 MiB + headroom


def _round_up(x, m):
    return ((x + m - 1) // m) * m


def _sublane_multiple(*dtypes):
    # f32 blocks need rows % 8 == 0, bf16 needs 16, int8/fp8 needs 32.
    itemsize = max(jnp.dtype(d).itemsize for d in dtypes)
    return {4: 8, 2: 16, 1: 32}.get(itemsize, 8)


def _charbonnier_kernel(p_ref, t_ref, o_ref, acc_ref, *, epsilon, tile_rows,
                        tiles_per_chunk, num_tiles, total_rows, needs_mask):
    c = pl.program_id(0)   # chunk ("parallel") axis
    j = pl.program_id(1)   # row-tile ("arbitrary"/reduction) axis
    tile_idx = c * tiles_per_chunk + j

    @pl.when(j == 0)
    def _():
        acc_ref[...] = jnp.zeros_like(acc_ref)

    d = p_ref[...].astype(jnp.float32) - t_ref[...].astype(jnp.float32)
    term = jnp.sqrt(d * d + jnp.float32(epsilon) ** 2)

    def fold(x):
        # Sublane fold (tile_rows, 128) -> (8, 128).  The reshape splits the
        # leading dim along (8, 128) vreg boundaries, so it is layout-free and
        # the reduction is one VALU add per incoming vreg.
        return x.reshape(tile_rows // 8, 8, LANES).sum(axis=0)

    if needs_mask:
        @pl.when(tile_idx < num_tiles - 1)
        def _():
            acc_ref[...] += fold(term)

        @pl.when(tile_idx == num_tiles - 1)
        def _():
            # Partial last block: mask rows past the true row count.  Keep this
            # a true select (NOT multiply-by-mask) so undefined data in the
            # padded region cannot leak NaN/Inf into the sum.
            row = jax.lax.broadcasted_iota(jnp.int32, term.shape, 0)
            grow = tile_idx * tile_rows + row
            acc_ref[...] += fold(
                jnp.where(grow < total_rows, term, jnp.float32(0.0)))
        # Overflow grid slots (tile_idx >= num_tiles, from an odd tile count
        # split across two chunks) fall through both branches: no contribution.
    else:
        acc_ref[...] += fold(term)

    @pl.when(j == tiles_per_chunk - 1)
    def _():
        # Single cross-lane/sublane reduction of the small (8,128) accumulator.
        o_ref[0, 0] = jnp.sum(acc_ref[...])


def _charbonnier_main_sum(p2d, t2d, epsilon, *, max_tile_rows=MAX_TILE_ROWS):
    """Sum of Charbonnier terms over a lane-dense (rows, 128) slab."""
    rows = p2d.shape[0]
    sub = _sublane_multiple(p2d.dtype, t2d.dtype)
    tile_rows = min(_round_up(max_tile_rows, sub), _round_up(rows, sub))
    num_tiles = pl.cdiv(rows, tile_rows)

    # Unconditional megacore split whenever there is more than one tile, so
    # both TensorCores on v7x get work even for odd tile counts.
    num_chunks = 2 if num_tiles >= 2 else 1
    tiles_per_chunk = pl.cdiv(num_tiles, num_chunks)

    # True if the last tile is partial OR the odd split produced an overflow slot.
    needs_mask = (num_chunks * tiles_per_chunk * tile_rows) != rows

    kernel = functools.partial(
        _charbonnier_kernel,
        epsilon=epsilon,
        tile_rows=tile_rows,
        tiles_per_chunk=tiles_per_chunk,
        num_tiles=num_tiles,
        total_rows=rows,
        needs_mask=needs_mask,
    )

    last_block = num_tiles - 1

    def row_block(c, j):
        # Clamp so a possible overflow slot re-reads the last valid block; the
        # kernel skips its contribution.
        return (jnp.minimum(c * tiles_per_chunk + j, last_block), 0)

    partials = pl.pallas_call(
        kernel,
        out_shape=jax.ShapeDtypeStruct((num_chunks, 1), jnp.float32),
        grid_spec=pltpu.PrefetchScalarGridSpec(
            num_scalar_prefetch=0,
            grid=(num_chunks, tiles_per_chunk),
            in_specs=[
                pl.BlockSpec((tile_rows, LANES), row_block),
                pl.BlockSpec((tile_rows, LANES), row_block),
            ],
            out_specs=pl.BlockSpec((1, 1), lambda c, j: (c, 0),
                                   memory_space=pltpu.SMEM),
            scratch_shapes=[pltpu.VMEM((8, LANES), jnp.float32)],
        ),
        compiler_params=pltpu.CompilerParams(
            dimension_semantics=("parallel", "arbitrary"),
            vmem_limit_bytes=VMEM_LIMIT_BYTES),
    )(p2d, t2d)

    return jnp.sum(partials)


def charbonnier_loss(pred, target, epsilon=1e-6, *, max_tile_rows=MAX_TILE_ROWS):
    assert pred.shape == target.shape
    n = pred.size
    eps2 = jnp.float32(epsilon) ** 2

    flat_p = jnp.ravel(pred)
    flat_t = jnp.ravel(target)

    rows = n // LANES
    tail = n - rows * LANES

    total = jnp.float32(0.0)

    if tail:
        # Ragged < 128-element tail: tiny plain-JAX sum instead of padding and
        # copying the full arrays just to make n a multiple of 128.
        tp = flat_p[rows * LANES:].astype(jnp.float32)
        tt = flat_t[rows * LANES:].astype(jnp.float32)
        total = total + jnp.sum(jnp.sqrt((tp - tt) ** 2 + eps2))

    if rows:
        if tail:
            p2d = flat_p[: rows * LANES].reshape(rows, LANES)
            t2d = flat_t[: rows * LANES].reshape(rows, LANES)
        else:
            # Free reshape of the contiguous ravel when n % 128 == 0.
            p2d = flat_p.reshape(rows, LANES)
            t2d = flat_t.reshape(rows, LANES)
        total = total + _charbonnier_main_sum(
            p2d, t2d, epsilon, max_tile_rows=max_tile_rows)

    return total / jnp.float32(n)


if __name__ == "__main__":
    def _ref(p, t, eps):
        return jnp.mean(jnp.sqrt((p - t) ** 2 + jnp.float32(eps) ** 2))

    key = jax.random.PRNGKey(0)

    # Primary test: shapes implied by the module usage (n % 128 == 0, 1 tile).
    k1, k2 = jax.random.split(key)
    pred = jax.random.normal(k1, (2, 4, 16, 16), dtype=jnp.float32)
    target = jax.random.normal(k2, (2, 4, 16, 16), dtype=jnp.float32)
    loss = charbonnier_loss(pred, target, epsilon=1e-6)
    jax.block_until_ready(loss)
    ref = _ref(pred, target, 1e-6)
    assert jnp.allclose(loss, ref, rtol=1e-4, atol=1e-6), (loss, ref)

    # Ragged test: n % 128 != 0 -> plain-JAX tail + kernel over the full rows.
    k3, k4 = jax.random.split(k1)
    p2 = jax.random.normal(k3, (2, 3, 17, 251), dtype=jnp.float32)
    t2 = jax.random.normal(k4, (2, 3, 17, 251), dtype=jnp.float32)
    l2 = charbonnier_loss(p2, t2, epsilon=1e-6)
    jax.block_until_ready(l2)
    r2 = _ref(p2, t2, 1e-6)
    assert jnp.allclose(l2, r2, rtol=1e-4, atol=1e-6), (l2, r2)

    # Odd tile count + ragged tail (small max_tile_rows to exercise the
    # two-chunk split, the overflow-slot skip and the partial-block mask).
    k5, k6 = jax.random.split(k2)
    p3 = jax.random.normal(k5, (19237,), dtype=jnp.float32)
    t3 = jax.random.normal(k6, (19237,), dtype=jnp.float32)
    l3 = charbonnier_loss(p3, t3, epsilon=1e-6, max_tile_rows=64)
    jax.block_until_ready(l3)
    r3 = _ref(p3, t3, 1e-6)
    assert jnp.allclose(l3, r3, rtol=1e-4, atol=1e-6), (l3, r3)

    # Even tile count with a partial last tile.
    k7, k8 = jax.random.split(k5)
    p4 = jax.random.normal(k7, (4, 4, 25, 128), dtype=jnp.float32)
    t4 = jax.random.normal(k8, (4, 4, 25, 128), dtype=jnp.float32)
    l4 = charbonnier_loss(p4, t4, epsilon=1e-6, max_tile_rows=128)
    jax.block_until_ready(l4)
    r4 = _ref(p4, t4, 1e-6)
    assert jnp.allclose(l4, r4, rtol=1e-4, atol=1e-6), (l4, r4)

    print("KERNEL_OK")
</pallas_src>

<mosaic_0001>
module attributes {stable_mosaic.version = 11 : i64} {
  func.func @_charbonnier_kernel(%arg0: i32, %arg1: i32, %arg2: memref<16x128xf32, #tpu.memory_space<vmem>>, %arg3: memref<16x128xf32, #tpu.memory_space<vmem>>, %arg4: memref<1x1xf32, #tpu.memory_space<smem>>, %arg5: memref<8x128xf32, #tpu.memory_space<vmem>>) attributes {dimension_semantics = [#tpu.dimension_semantics<parallel>, #tpu.dimension_semantics<arbitrary>], iteration_bounds = array<i64: 1, 1>, scalar_prefetch = 0 : i64, scratch_operands = 1 : i64, tpu.core_type = #tpu.core_type<tc>, window_params = [{transform_indices = @transform_0, window_bounds = array<i64: 16, 128>}, {transform_indices = @transform_1, window_bounds = array<i64: 16, 128>}, {transform_indices = @transform_2, window_bounds = array<i64: 1, 1>}]} {
    %c0_i32 = arith.constant 0 : i32
    %0 = arith.cmpi eq, %arg1, %c0_i32 : i32
    %1 = arith.extui %0 : i1 to i32
    %c0_i32_0 = arith.constant 0 : i32
    %2 = arith.cmpi ne, %1, %c0_i32_0 : i32
    scf.if %2 {
      %cst_11 = arith.constant 0.000000e+00 : f32
      %19 = vector.broadcast %cst_11 : f32 to vector<8x128xf32>
      %c0_12 = arith.constant 0 : index
      %c0_13 = arith.constant 0 : index
      %20 = vector.load %arg5[%c0_12, %c0_13] : memref<8x128xf32, #tpu.memory_space<vmem>>, vector<8x128xf32>
      tpu.vector_store %arg5[%c0_12, %c0_13], %19 {strides = array<i32>} : memref<8x128xf32, #tpu.memory_space<vmem>>, vector<8x128xf32>,
    } else {
    }
    %c0 = arith.constant 0 : index
    %c0_1 = arith.constant 0 : index
    %3 = vector.load %arg2[%c0, %c0_1] : memref<16x128xf32, #tpu.memory_space<vmem>>, vector<16x128xf32>
    %c0_2 = arith.constant 0 : index
    %c0_3 = arith.constant 0 : index
    %4 = vector.load %arg3[%c0_2, %c0_3] : memref<16x128xf32, #tpu.memory_space<vmem>>, vector<16x128xf32>
    %5 = arith.subf %3, %4 : vector<16x128xf32>
    %6 = arith.mulf %5, %5 : vector<16x128xf32>
    %cst = arith.constant 9.99999997E-7 : f32
    %7 = arith.mulf %cst, %cst : f32
    %8 = vector.broadcast %7 : f32 to vector<16x128xf32>
    %9 = arith.addf %6, %8 : vector<16x128xf32>
    %10 = math.sqrt %9 : vector<16x128xf32>
    %c0_4 = arith.constant 0 : index
    %c0_5 = arith.constant 0 : index
    %11 = vector.load %arg5[%c0_4, %c0_5] : memref<8x128xf32, #tpu.memory_space<vmem>>, vector<8x128xf32>
    %12 = vector.shape_cast %10 : vector<16x128xf32> to vector<2x8x128xf32>
    %cst_6 = arith.constant dense<0.000000e+00> : vector<8x128xf32>
    %13 = vector.multi_reduction <add>, %12, %cst_6 [0] : vector<2x8x128xf32> to vector<8x128xf32>
    %14 = arith.addf %11, %13 : vector<8x128xf32>
    %c0_7 = arith.constant 0 : index
    %c0_8 = arith.constant 0 : index
    %15 = vector.load %arg5[%c0_7, %c0_8] : memref<8x128xf32, #tpu.memory_space<vmem>>, vector<8x128xf32>
    tpu.vector_store %arg5[%c0_7, %c0_8], %14 {strides = array<i32>} : memref<8x128xf32, #tpu.memory_space<vmem>>, vector<8x128xf32>,
    %c0_i32_9 = arith.constant 0 : i32
    %16 = arith.cmpi eq, %arg1, %c0_i32_9 : i32
    %17 = arith.extui %16 : i1 to i32
    %c0_i32_10 = arith.constant 0 : i32
    %18 = arith.cmpi ne, %17, %c0_i32_10 : i32
    scf.if %18 {
      %c0_11 = arith.constant 0 : index
      %c0_12 = arith.constant 0 : index
      %19 = vector.load %arg5[%c0_11, %c0_12] : memref<8x128xf32, #tpu.memory_space<vmem>>, vector<8x128xf32>
      %20 = vector.shape_cast %19 : vector<8x128xf32> to vector<1x8x128xf32>
      %cst_13 = arith.constant dense<0.000000e+00> : vector<1xf32>
      %21 = vector.multi_reduction <add>, %20, %cst_13 [1, 2] : vector<1x8x128xf32> to vector<1xf32>
      %22 = vector.shape_cast %21 : vector<1xf32> to vector<1x1x1xf32>
      %23 = vector.extract %22[0, 0, 0] : f32 from vector<1x1x1xf32>
      %c0_14 = arith.constant 0 : index
      %c0_15 = arith.constant 0 : index
      %24 = memref.load %arg4[%c0_14, %c0_15] : memref<1x1xf32, #tpu.memory_space<smem>>
      memref.store %23, %arg4[%c0_14, %c0_15] : memref<1x1xf32, #tpu.memory_space<smem>>
    } else {
    }
    return
  }
  func.func @transform_0(%arg0: i32, %arg1: i32) -> (i32, i32) {
    %c1_i32 = arith.constant 1 : i32
    %0 = arith.muli %arg0, %c1_i32 : i32
    %1 = arith.addi %0, %arg1 : i32
    %c0_i32 = arith.constant 0 : i32
    %2 = arith.minsi %1, %c0_i32 : i32
    %c0_i32_0 = arith.constant 0 : i32
    %c0_i32_1 = arith.constant 0 : i32
    return %2, %c0_i32_0 : i32, i32
  }
  func.func @transform_1(%arg0: i32, %arg1: i32) -> (i32, i32) {
    %c1_i32 = arith.constant 1 : i32
    %0 = arith.muli %arg0, %c1_i32 : i32
    %1 = arith.addi %0, %arg1 : i32
    %c0_i32 = arith.constant 0 : i32
    %2 = arith.minsi %1, %c0_i32 : i32
    %c0_i32_0 = arith.constant 0 : i32
    %c0_i32_1 = arith.constant 0 : i32
    return %2, %c0_i32_0 : i32, i32
  }
  func.func @transform_2(%arg0: i32, %arg1: i32) -> (i32, i32) {
    %c0_i32 = arith.constant 0 : i32
    %c0_i32_0 = arith.constant 0 : i32
    return %arg0, %c0_i32 : i32, i32
  }
}

</mosaic_0001>

<llo_original>
// kernel: tpu_custom_call.1
$region0: #{tpu_custom_call.1}
  #allocation0 [shape = 'u32[]', space=smem, size = 0x4, offset = 0x4, fixed_abs, tag = 'smem constant byte address 0x4 - core index']
  #allocation1 [shape = 'u32[144,128]{1,0:T(1,128)}', space=vmem, size = 0x12000, scoped, tag = 'internal scratch']
  #allocation2 [shape = 'f32[8,128]{1,0:T(8,128)}', space=vmem, size = 0x1000, scoped, tag = 'scratch operand']
  %s0 = inlined_call_operand.hbm [shape: f32[16,128], index: 0, kind: input, shape index: {}]
  %s1 = inlined_call_operand.hbm [shape: f32[16,128], index: 1, kind: input, shape index: {}]
  %s2 = inlined_call_operand.hbm [shape: f32[1,1], index: 2, kind: output, shape index: {}]
  %s3 = sld [smem:[#allocation0]]
  $region34: #{tpu_custom_call.1} parent=0
    _
  %s5 = ssub.s32 1, %s3
  %s6 = scalar_select 0, %s5, %s3
  $region1: #{tpu_custom_call.1} parent=0
    #allocation3 [shape = 'u8[8192]{0}', space=vmem, size = 0x2000, scoped, tag = 'input window, operand 0, single buffered']
    #allocation4 [shape = 's32[1]{0}', space=sflag, size = 0x4, scoped, tag = 'scoped memory for tpu_custom_call.1']
    #allocation5 [shape = 's32[1]{0}', space=sflag, size = 0x4, scoped, tag = 'scoped memory for tpu_custom_call.1']
    #allocation6 [shape = 'u8[8192]{0}', space=vmem, size = 0x2000, scoped, tag = 'input window, operand 1, single buffered']
    #allocation7 [shape = 's32[1]{0}', space=sflag, size = 0x4, scoped, tag = 'scoped memory for tpu_custom_call.1']
    #allocation8 [shape = 'u8[512]{0}', space=smem, size = 0x200, scoped, tag = 'output window, operand 0, single buffered']
    %7 = vsyncpa [#allocation4], 0
    %8 = vsyncpa [#allocation7], 0
    %9 = vsyncpa [#allocation5], 0
    // Predicated region
    $region2: #{tpu_custom_call.1} parent=1 // pred_check
      _
    $region3: #{tpu_custom_call.1} parent=1 // pred_check_branch
      %11 = sbr.rel (0) target = $region5
    $region4: #{tpu_custom_call.1} parent=1 // pred_region
      %s12 = sadd.s32 0, 0
      %p13 = scmp.lt.s32.totalorder %s12, 0
      %s14 = scalar_select %p13, %s12, 0
      %s15 = smul.u32 2, %s14
      %s17 = ssub.s32 256, 256
      %18 = vsyncadd [#allocation4], %s17
      %s19 = smul.addr %s15, 128
      %s20 = scalar_lea.hbm %s0, %s19
      %s21 = sshll.u32 [#allocation3], 4
      %s22 = int_to_ptr.vmem [resolvable:$true] %s21
      %27 = dma.hbm_to_vmem [thread:$0]  %s20, 256, %s22, [#allocation4], 128, 128, 8
    $region5: #{tpu_custom_call.1} parent=1 // pred_fallthru
      _
    // Predicated region
    $region6: #{tpu_custom_call.1} parent=1 // pred_check
      _
    $region7: #{tpu_custom_call.1} parent=1 // pred_check_branch
      %29 = sbr.rel (0) target = $region9
    $region8: #{tpu_custom_call.1} parent=1 // pred_region
      %s30 = sadd.s32 0, 0
      %p31 = scmp.lt.s32.totalorder %s30, 0
      %s32 = scalar_select %p31, %s30, 0
      %s33 = smul.u32 2, %s32
      %s35 = ssub.s32 256, 256
      %36 = vsyncadd [#allocation7], %s35
      %s37 = smul.addr %s33, 128
      %s38 = scalar_lea.hbm %s1, %s37
      %s39 = sshll.u32 [#allocation6], 4
      %s40 = int_to_ptr.vmem [resolvable:$true] %s39
      %45 = dma.hbm_to_vmem [thread:$0]  %s38, 256, %s40, [#allocation7], 128, 128, 8
    $region9: #{tpu_custom_call.1} parent=1 // pred_fallthru
      _
    // Predicated region
    $region10: #{tpu_custom_call.1} parent=1 // pred_check
      _
    $region11: #{tpu_custom_call.1} parent=1 // pred_check_branch
      %47 = sbr.rel (0) target = $region13
    $region12: #{tpu_custom_call.1} parent=1 // pred_region
      %48 = dma.done [#allocation4], 256
    $region13: #{tpu_custom_call.1} parent=1 // pred_fallthru
      _
    // Predicated region
    $region14: #{tpu_custom_call.1} parent=1 // pred_check
      _
    $region15: #{tpu_custom_call.1} parent=1 // pred_check_branch
      %50 = sbr.rel (0) target = $region17
    $region16: #{tpu_custom_call.1} parent=1 // pred_region
      %51 = dma.done [#allocation7], 256
    $region17: #{tpu_custom_call.1} parent=1 // pred_fallthru
      _
    %s52 = sadd.s32 0, 0
    %p53 = scmp.lt.s32.totalorder %s52, 0
    %s54 = scalar_select %p53, %s52, 0
    %s55 = smul.u32 2, %s54
    %s56 = sadd.s32 0, 0
    %p57 = scmp.lt.s32.totalorder %s56, 0
    %s58 = scalar_select %p57, %s56, 0
    %s59 = smul.u32 2, %s58
    %p60 = scmp.eq.s32.totalorder 0, 0
    // Predicated region
    $region18: #{tpu_custom_call.1} parent=1 // pred_check
      %p61 = pneg %p60
    $region19: #{tpu_custom_call.1} parent=1 // pred_check_branch
      %63 = sbr.rel (%p61) target = $region21
    $region20: #{tpu_custom_call.1} parent=1 // pred_region
      %64 = vst [vmem:[#allocation2] sm:$0xff] 0.0
    $region21: #{tpu_custom_call.1} parent=1 // pred_fallthru
      _
    %v65 = vld [vmem:[#allocation3] sm:$0xff]
    %v66 = vld [vmem:[#allocation3 + $0x8] sm:$0xff]
    %v67 = vld [vmem:[#allocation6] sm:$0xff]
    %v68 = vld [vmem:[#allocation6 + $0x8] sm:$0xff]
    %v69 = vsub.f32 %v65, %v67
    %v70 = vsub.f32 %v66, %v68
    %v71 = vmul.f32 %v69, %v69
    %v72 = vmul.f32 %v70, %v70
    %v73 = vadd.f32 %v71, 1e-12
    %v74 = vadd.f32 %v72, 1e-12
    %v75 = vrsqrt.pop %v73
    %v76 = vmul.f32 %v73, %v75
    %vm77 = vcmp.eq.f32.partialorder %v73, inf
    %v78 = vsel %vm77, %v73, %v76
    %vm79 = vcmp.eq.f32.partialorder %v73, 0.0
    %v80 = vand.u32 %v73, 2147483648
    %v81 = vsel %vm79, %v80, %v78
    %v82 = vrsqrt.pop %v74
    %v83 = vmul.f32 %v74, %v82
    %vm84 = vcmp.eq.f32.partialorder %v74, inf
    %v85 = vsel %vm84, %v74, %v83
    %vm86 = vcmp.eq.f32.partialorder %v74, 0.0
    %v87 = vand.u32 %v74, 2147483648
    %v88 = vsel %vm86, %v87, %v85
    %v89 = vld [vmem:[#allocation2] sm:$0xff]
    %v90 = vadd.f32 %v81, %v88
    %v91 = vadd.f32 %v89, %v90
    %92 = vst [vmem:[#allocation2] sm:$0xff] %v91
    // Predicated region
    $region22: #{tpu_custom_call.1} parent=1 // pred_check
      %p93 = pneg %p60
    $region23: #{tpu_custom_call.1} parent=1 // pred_check_branch
      %95 = sbr.rel (%p93) target = $region25
    $region24: #{tpu_custom_call.1} parent=1 // pred_region
      %v96 = vld [vmem:[#allocation2] sm:$0xff]
      %97 = vadd.xlane.f32.xlu0 %v96
      %v98 = vpop.xlane.xlu0 %97
      %v99 = vrot.slane %v98, 4
      %v100 = vadd.f32 %v98, %v99
      %v101 = vrot.slane %v100, 2
      %v102 = vadd.f32 %v100, %v101
      %v103 = vrot.slane %v102, 1
      %v104 = vadd.f32 %v102, %v103
      %s105 = vtos %v104
      %s106 = scalar_lea.smem [#allocation8], 0
      %107 = sst [smem:[%s106]] %s105
    $region25: #{tpu_custom_call.1} parent=1 // pred_fallthru
      _
    // Predicated region
    $region26: #{tpu_custom_call.1} parent=1 // pred_check
      _
    $region27: #{tpu_custom_call.1} parent=1 // pred_check_branch
      %109 = sbr.rel (0) target = $region29
    $region28: #{tpu_custom_call.1} parent=1 // pred_region
      %s111 = ssub.s32 16, 16
      %112 = vsyncadd [#allocation5], %s111
      %115 = dma.smem_to_hbm [#allocation8], 16, %s2, [#allocation5]
    $region29: #{tpu_custom_call.1} parent=1 // pred_fallthru
      _
    // Predicated region
    $region30: #{tpu_custom_call.1} parent=1 // pred_check
      _
    $region31: #{tpu_custom_call.1} parent=1 // pred_check_branch
      %117 = sbr.rel (0) target = $region33
    $region32: #{tpu_custom_call.1} parent=1 // pred_region
      %118 = dma.done [#allocation5], 16
    $region33: #{tpu_custom_call.1} parent=1 // pred_fallthru
      _
    %119 = sfence
    %120 = vsyncpa [#allocation4], 1
    %121 = vsyncpa [#allocation7], 1
    %122 = vsyncpa [#allocation5], 1

</llo_original>
